<compile_context>
chip_gen: v7x
topology: tpu7x:2x2x1
jax: 0.10.0
libtpu: 0.0.40
codegen_flags: <defaults>
</compile_context>

<pallas_src>
import jax
import jax.numpy as jnp
from jax.experimental import pallas as pl
from jax.experimental.pallas import tpu as pltpu

BN_EPS = 1e-5

# Logical (PyTorch) feature widths and their lane-padded (multiple-of-128) widths.
H1, H2, OUT = 300, 100, 10
H1P, H2P, OUTP = 384, 128, 128


def _round_up(n, m):
    return (n + m - 1) // m * m


def mlp_kernel(x_ref,
               w1_ref, g1_ref, beta1_ref,
               w2_ref, g2_ref, beta2_ref,
               w3_ref, b3_ref,
               o_ref):
    inv_b = jnp.float32(1.0 / x_ref.shape[0])

    def bn_relu(z, g, beta):
        # One-pass batch statistics on the pre-bias activations (linear bias cancels
        # exactly under train-mode BN, see header comment).
        s = jnp.sum(z, axis=0, keepdims=True)
        ss = jnp.sum(z * z, axis=0, keepdims=True)
        mu = s * inv_b
        var = jnp.maximum(ss * inv_b - mu * mu, 0.0)     # clamp tiny negatives
        scale = g * jax.lax.rsqrt(var + BN_EPS)          # (1, H) row math; rsqrt -> EUP
        shift = beta - mu * scale                        # (1, H) row math
        return jnp.maximum(z * scale + shift, 0.0)       # 3 full-tile VPU ops

    # Layer 1: Linear -> BN(batch stats) -> ReLU.  bf16 MXU inputs, f32 accumulation.
    h = bn_relu(jnp.dot(x_ref[...].astype(jnp.bfloat16), w1_ref[...],
                        preferred_element_type=jnp.float32),
                g1_ref[...], beta1_ref[...])

    # Layer 2: Linear -> BN(batch stats) -> ReLU.
    h = bn_relu(jnp.dot(h.astype(jnp.bfloat16), w2_ref[...],
                        preferred_element_type=jnp.float32),
                g2_ref[...], beta2_ref[...])

    # Output: Linear(100 -> 10), lane-padded to 128 so the store is a full-width vst.
    out = jnp.dot(h.astype(jnp.bfloat16), w3_ref[...],
                  preferred_element_type=jnp.float32) + b3_ref[...]
    o_ref[...] = out.astype(o_ref.dtype)


def _pad2(a, rows, cols, dtype=None):
    a = jnp.pad(a, ((0, rows - a.shape[0]), (0, cols - a.shape[1])))
    return a if dtype is None else a.astype(dtype)


def pack_params(params, in_dim):
    """Zero-pad parameters to lane multiples; matmul weights stored as bf16.

    b1 / b2 are intentionally not packed: a Linear bias immediately followed by a
    train-mode BatchNorm cancels exactly, so the kernel never needs them.
    """
    in_p = _round_up(in_dim, 128)
    return {
        "w1": _pad2(params["w1"], in_p, H1P, jnp.bfloat16),
        "g1": _pad2(params["g1"], 1, H1P),
        "beta1": _pad2(params["beta1"], 1, H1P),
        "w2": _pad2(params["w2"], H1P, H2P, jnp.bfloat16),
        "g2": _pad2(params["g2"], 1, H2P),
        "beta2": _pad2(params["beta2"], 1, H2P),
        "w3": _pad2(params["w3"], H2P, OUTP, jnp.bfloat16),
        "b3": _pad2(params["b3"], 1, OUTP),
    }


@jax.jit
def net_forward(x, pp):
    """x: (B, in_dim) float32.  pp: packed (padded, bf16-weight) params."""
    B, in_dim = x.shape
    in_p = pp["w1"].shape[0]
    if in_dim != in_p:  # pad the K dim of the first matmul to a lane multiple
        x = jnp.pad(x, ((0, 0), (0, in_p - in_dim)))

    args = (x,
            pp["w1"], pp["g1"], pp["beta1"],
            pp["w2"], pp["g2"], pp["beta2"],
            pp["w3"], pp["b3"])

    flops = 2 * B * (in_p * H1P + H1P * H2P + H2P * OUTP)
    bytes_accessed = sum(int(a.size) * a.dtype.itemsize for a in args) + B * OUTP * 4
    cost = pl.CostEstimate(flops=flops,
                           transcendentals=H1P + H2P,   # rsqrt per BN feature lane
                           bytes_accessed=bytes_accessed)

    vmem = pl.BlockSpec(memory_space=pltpu.MemorySpace.VMEM)
    out = pl.pallas_call(
        mlp_kernel,
        out_shape=jax.ShapeDtypeStruct((B, OUTP), jnp.float32),
        in_specs=[vmem] * len(args),
        out_specs=vmem,
        cost_estimate=cost,
    )(*args)
    return out[:, :OUT]  # drop padded lanes -> (B, 10)


def init_params(key, in_dim):
    """PyTorch-shaped parameters (weights stored transposed: (in, out))."""
    ks = jax.random.split(key, 6)
    scale = 0.1
    return {
        "w1": scale * jax.random.normal(ks[0], (in_dim, H1), jnp.float32),
        "b1": scale * jax.random.normal(ks[1], (1, H1), jnp.float32),
        "g1": jnp.ones((1, H1), jnp.float32),       # BN gamma (torch default init)
        "beta1": jnp.zeros((1, H1), jnp.float32),   # BN beta
        "w2": scale * jax.random.normal(ks[2], (H1, H2), jnp.float32),
        "b2": scale * jax.random.normal(ks[3], (1, H2), jnp.float32),
        "g2": jnp.ones((1, H2), jnp.float32),
        "beta2": jnp.zeros((1, H2), jnp.float32),
        "w3": scale * jax.random.normal(ks[4], (H2, OUT), jnp.float32),
        "b3": scale * jax.random.normal(ks[5], (1, OUT), jnp.float32),
    }


def net_forward_ref(x, p):
    """Pure-JAX f32 reference (same train-mode BN semantics as the torch module,
    including the linear biases, which cancel mathematically)."""
    h = x @ p["w1"] + p["b1"]
    mu = h.mean(0, keepdims=True); var = ((h - mu) ** 2).mean(0, keepdims=True)
    h = jnp.maximum((h - mu) / jnp.sqrt(var + BN_EPS) * p["g1"] + p["beta1"], 0.0)
    h = h @ p["w2"] + p["b2"]
    mu = h.mean(0, keepdims=True); var = ((h - mu) ** 2).mean(0, keepdims=True)
    h = jnp.maximum((h - mu) / jnp.sqrt(var + BN_EPS) * p["g2"] + p["beta2"], 0.0)
    return h @ p["w3"] + p["b3"]


if __name__ == "__main__":
    key = jax.random.PRNGKey(0)
    k_x, k_p = jax.random.split(key)

    batch, in_dim = 8, 64
    x = jax.random.normal(k_x, (batch, in_dim), jnp.float32)
    params = init_params(k_p, in_dim)
    packed = pack_params(params, in_dim)

    out = net_forward(x, packed)
    out = jax.block_until_ready(out)

    ref = net_forward_ref(x, params)
    assert out.shape == (batch, OUT), out.shape
    # bf16 MXU inputs (f32 accumulation, f32 BN math) loosen agreement vs the
    # all-f32 reference; tolerance widened accordingly.
    assert jnp.allclose(out, ref, atol=1e-1, rtol=5e-2), "mismatch vs reference"

    print("KERNEL_OK")
</pallas_src>

<mosaic_0001>
module attributes {stable_mosaic.version = 11 : i64} {
  func.func @mlp_kernel(%arg0: memref<8x128xf32, #tpu.memory_space<vmem>>, %arg1: memref<128x384xbf16, #tpu.memory_space<vmem>>, %arg2: memref<1x384xf32, #tpu.memory_space<vmem>>, %arg3: memref<1x384xf32, #tpu.memory_space<vmem>>, %arg4: memref<384x128xbf16, #tpu.memory_space<vmem>>, %arg5: memref<1x128xf32, #tpu.memory_space<vmem>>, %arg6: memref<1x128xf32, #tpu.memory_space<vmem>>, %arg7: memref<128x128xbf16, #tpu.memory_space<vmem>>, %arg8: memref<1x128xf32, #tpu.memory_space<vmem>>, %arg9: memref<8x128xf32, #tpu.memory_space<vmem>>) attributes {dimension_semantics = [], scalar_prefetch = 0 : i64, scratch_operands = 0 : i64, tpu.core_type = #tpu.core_type<tc>} {
    %c0 = arith.constant 0 : index
    %c0_0 = arith.constant 0 : index
    %0 = vector.load %arg0[%c0, %c0_0] : memref<8x128xf32, #tpu.memory_space<vmem>>, vector<8x128xf32>
    %1 = arith.truncf %0 : vector<8x128xf32> to vector<8x128xbf16>
    %c0_1 = arith.constant 0 : index
    %c0_2 = arith.constant 0 : index
    %2 = vector.load %arg1[%c0_1, %c0_2] : memref<128x384xbf16, #tpu.memory_space<vmem>>, vector<128x384xbf16>
    %cst = arith.constant dense<0.000000e+00> : vector<8x384xf32>
    %3 = tpu.matmul %1, %2, %cst {dimension_numbers = #tpu.dot_dimension_numbers<[1], [0], [0], [1], [0, 0, 1, 1], [], []>} : vector<8x128xbf16>, vector<128x384xbf16>, vector<8x384xf32> -> vector<8x384xf32>
    %c0_3 = arith.constant 0 : index
    %c0_4 = arith.constant 0 : index
    %4 = vector.load %arg2[%c0_3, %c0_4] : memref<1x384xf32, #tpu.memory_space<vmem>>, vector<1x384xf32>
    %c0_5 = arith.constant 0 : index
    %c0_6 = arith.constant 0 : index
    %5 = vector.load %arg3[%c0_5, %c0_6] : memref<1x384xf32, #tpu.memory_space<vmem>>, vector<1x384xf32>
    %cst_7 = arith.constant dense<0.000000e+00> : vector<384xf32>
    %6 = vector.multi_reduction <add>, %3, %cst_7 [0] : vector<8x384xf32> to vector<384xf32>
    %7 = vector.shape_cast %6 : vector<384xf32> to vector<1x384xf32>
    %8 = arith.mulf %3, %3 : vector<8x384xf32>
    %cst_8 = arith.constant dense<0.000000e+00> : vector<384xf32>
    %9 = vector.multi_reduction <add>, %8, %cst_8 [0] : vector<8x384xf32> to vector<384xf32>
    %10 = vector.shape_cast %9 : vector<384xf32> to vector<1x384xf32>
    %cst_9 = arith.constant 1.250000e-01 : f32
    %11 = vector.broadcast %cst_9 : f32 to vector<1x384xf32>
    %12 = arith.mulf %7, %11 : vector<1x384xf32>
    %cst_10 = arith.constant 1.250000e-01 : f32
    %13 = vector.broadcast %cst_10 : f32 to vector<1x384xf32>
    %14 = arith.mulf %10, %13 : vector<1x384xf32>
    %15 = arith.mulf %12, %12 : vector<1x384xf32>
    %16 = arith.subf %14, %15 : vector<1x384xf32>
    %cst_11 = arith.constant 0.000000e+00 : f32
    %17 = vector.broadcast %cst_11 : f32 to vector<1x384xf32>
    %18 = arith.maximumf %16, %17 : vector<1x384xf32>
    %cst_12 = arith.constant 9.99999974E-6 : f32
    %19 = vector.broadcast %cst_12 : f32 to vector<1x384xf32>
    %20 = arith.addf %18, %19 : vector<1x384xf32>
    %21 = math.rsqrt %20 : vector<1x384xf32>
    %22 = arith.mulf %4, %21 : vector<1x384xf32>
    %23 = arith.mulf %12, %22 : vector<1x384xf32>
    %24 = arith.subf %5, %23 : vector<1x384xf32>
    %25 = vector.broadcast %22 : vector<1x384xf32> to vector<8x384xf32>
    %26 = arith.mulf %3, %25 : vector<8x384xf32>
    %27 = vector.broadcast %24 : vector<1x384xf32> to vector<8x384xf32>
    %28 = arith.addf %26, %27 : vector<8x384xf32>
    %cst_13 = arith.constant 0.000000e+00 : f32
    %29 = vector.broadcast %cst_13 : f32 to vector<8x384xf32>
    %30 = arith.maximumf %28, %29 : vector<8x384xf32>
    %31 = arith.truncf %30 : vector<8x384xf32> to vector<8x384xbf16>
    %c0_14 = arith.constant 0 : index
    %c0_15 = arith.constant 0 : index
    %32 = vector.load %arg4[%c0_14, %c0_15] : memref<384x128xbf16, #tpu.memory_space<vmem>>, vector<384x128xbf16>
    %cst_16 = arith.constant dense<0.000000e+00> : vector<8x128xf32>
    %33 = tpu.matmul %31, %32, %cst_16 {dimension_numbers = #tpu.dot_dimension_numbers<[1], [0], [0], [1], [0, 0, 1, 1], [], []>} : vector<8x384xbf16>, vector<384x128xbf16>, vector<8x128xf32> -> vector<8x128xf32>
    %c0_17 = arith.constant 0 : index
    %c0_18 = arith.constant 0 : index
    %34 = vector.load %arg5[%c0_17, %c0_18] : memref<1x128xf32, #tpu.memory_space<vmem>>, vector<1x128xf32>
    %c0_19 = arith.constant 0 : index
    %c0_20 = arith.constant 0 : index
    %35 = vector.load %arg6[%c0_19, %c0_20] : memref<1x128xf32, #tpu.memory_space<vmem>>, vector<1x128xf32>
    %cst_21 = arith.constant dense<0.000000e+00> : vector<128xf32>
    %36 = vector.multi_reduction <add>, %33, %cst_21 [0] : vector<8x128xf32> to vector<128xf32>
    %37 = vector.shape_cast %36 : vector<128xf32> to vector<1x128xf32>
    %38 = arith.mulf %33, %33 : vector<8x128xf32>
    %cst_22 = arith.constant dense<0.000000e+00> : vector<128xf32>
    %39 = vector.multi_reduction <add>, %38, %cst_22 [0] : vector<8x128xf32> to vector<128xf32>
    %40 = vector.shape_cast %39 : vector<128xf32> to vector<1x128xf32>
    %cst_23 = arith.constant 1.250000e-01 : f32
    %41 = vector.broadcast %cst_23 : f32 to vector<1x128xf32>
    %42 = arith.mulf %37, %41 : vector<1x128xf32>
    %cst_24 = arith.constant 1.250000e-01 : f32
    %43 = vector.broadcast %cst_24 : f32 to vector<1x128xf32>
    %44 = arith.mulf %40, %43 : vector<1x128xf32>
    %45 = arith.mulf %42, %42 : vector<1x128xf32>
    %46 = arith.subf %44, %45 : vector<1x128xf32>
    %cst_25 = arith.constant 0.000000e+00 : f32
    %47 = vector.broadcast %cst_25 : f32 to vector<1x128xf32>
    %48 = arith.maximumf %46, %47 : vector<1x128xf32>
    %cst_26 = arith.constant 9.99999974E-6 : f32
    %49 = vector.broadcast %cst_26 : f32 to vector<1x128xf32>
    %50 = arith.addf %48, %49 : vector<1x128xf32>
    %51 = math.rsqrt %50 : vector<1x128xf32>
    %52 = arith.mulf %34, %51 : vector<1x128xf32>
    %53 = arith.mulf %42, %52 : vector<1x128xf32>
    %54 = arith.subf %35, %53 : vector<1x128xf32>
    %55 = vector.broadcast %52 : vector<1x128xf32> to vector<8x128xf32>
    %56 = arith.mulf %33, %55 : vector<8x128xf32>
    %57 = vector.broadcast %54 : vector<1x128xf32> to vector<8x128xf32>
    %58 = arith.addf %56, %57 : vector<8x128xf32>
    %cst_27 = arith.constant 0.000000e+00 : f32
    %59 = vector.broadcast %cst_27 : f32 to vector<8x128xf32>
    %60 = arith.maximumf %58, %59 : vector<8x128xf32>
    %61 = arith.truncf %60 : vector<8x128xf32> to vector<8x128xbf16>
    %c0_28 = arith.constant 0 : index
    %c0_29 = arith.constant 0 : index
    %62 = vector.load %arg7[%c0_28, %c0_29] : memref<128x128xbf16, #tpu.memory_space<vmem>>, vector<128x128xbf16>
    %cst_30 = arith.constant dense<0.000000e+00> : vector<8x128xf32>
    %63 = tpu.matmul %61, %62, %cst_30 {dimension_numbers = #tpu.dot_dimension_numbers<[1], [0], [0], [1], [0, 0, 1, 1], [], []>} : vector<8x128xbf16>, vector<128x128xbf16>, vector<8x128xf32> -> vector<8x128xf32>
    %c0_31 = arith.constant 0 : index
    %c0_32 = arith.constant 0 : index
    %64 = vector.load %arg8[%c0_31, %c0_32] : memref<1x128xf32, #tpu.memory_space<vmem>>, vector<1x128xf32>
    %65 = vector.broadcast %64 : vector<1x128xf32> to vector<8x128xf32>
    %66 = arith.addf %63, %65 : vector<8x128xf32>
    %c0_33 = arith.constant 0 : index
    %c0_34 = arith.constant 0 : index
    %67 = vector.load %arg9[%c0_33, %c0_34] : memref<8x128xf32, #tpu.memory_space<vmem>>, vector<8x128xf32>
    tpu.vector_store %arg9[%c0_33, %c0_34], %66 {strides = array<i32>} : memref<8x128xf32, #tpu.memory_space<vmem>>, vector<8x128xf32>,
    return
  }
}

</mosaic_0001>

<llo_original>
// kernel: net_forward.1
$region0: #{net_forward.1}
  #allocation0 [shape = 'u32[]', space=smem, size = 0x4, offset = 0x4, fixed_abs, tag = 'smem constant byte address 0x4 - core index']
  #allocation1 [shape = 'u32[144,128]{1,0:T(1,128)}', space=vmem, size = 0x12000, scoped, tag = 'internal scratch']
  %s0 = inlined_call_operand.vmem [shape: f32[8,128], index: 0, kind: input, shape index: {}]
  %s1 = inlined_call_operand.hbm [shape: bf16[128,384], index: 1, kind: input, shape index: {}]
  %s2 = inlined_call_operand.vmem [shape: f32[1,384], index: 2, kind: input, shape index: {}]
  %s3 = inlined_call_operand.vmem [shape: f32[1,384], index: 3, kind: input, shape index: {}]
  %s4 = inlined_call_operand.hbm [shape: bf16[384,128], index: 4, kind: input, shape index: {}]
  %s5 = inlined_call_operand.vmem [shape: f32[1,128], index: 5, kind: input, shape index: {}]
  %s6 = inlined_call_operand.vmem [shape: f32[1,128], index: 6, kind: input, shape index: {}]
  %s7 = inlined_call_operand.hbm [shape: bf16[128,128], index: 7, kind: input, shape index: {}]
  %s8 = inlined_call_operand.vmem [shape: f32[1,128], index: 8, kind: input, shape index: {}]
  %s9 = inlined_call_operand.hbm [shape: f32[8,128], index: 9, kind: output, shape index: {}]
  %s10 = sld [smem:[#allocation0]]
  $region58: #{net_forward.1} parent=0
    _
  %s12 = ssub.s32 1, %s10
  %s13 = scalar_select 0, %s12, %s10
  $region1: #{net_forward.1} parent=0
    #allocation2 [shape = 'u8[98304]{0}', space=vmem, size = 0x18000, scoped, tag = 'input window, operand 1, single buffered']
    #allocation3 [shape = 's32[1]{0}', space=sflag, size = 0x4, scoped, tag = 'scoped memory for net_forward.1']
    #allocation4 [shape = 's32[1]{0}', space=sflag, size = 0x4, scoped, tag = 'scoped memory for net_forward.1']
    #allocation5 [shape = 'u8[98304]{0}', space=vmem, size = 0x18000, scoped, tag = 'input window, operand 4, single buffered']
    #allocation6 [shape = 's32[1]{0}', space=sflag, size = 0x4, scoped, tag = 'scoped memory for net_forward.1']
    #allocation7 [shape = 'u8[32768]{0}', space=vmem, size = 0x8000, scoped, tag = 'input window, operand 7, single buffered']
    #allocation8 [shape = 'u8[4096]{0}', space=vmem, size = 0x1000, scoped, tag = 'output window, operand 0, single buffered']
    %14 = vsyncpa [#allocation3], 0
    %15 = vsyncpa [#allocation6], 0
    %16 = vsyncpa [#allocation4], 0
    // Predicated region
    $region2: #{net_forward.1} parent=1 // pred_check
      _
    $region3: #{net_forward.1} parent=1 // pred_check_branch
      %18 = sbr.rel (0) target = $region5
    $region4: #{net_forward.1} parent=1 // pred_region
      _
    $region5: #{net_forward.1} parent=1 // pred_fallthru
      _
    // Predicated region
    $region6: #{net_forward.1} parent=1 // pred_check
      _
    $region7: #{net_forward.1} parent=1 // pred_check_branch
      %20 = sbr.rel (0) target = $region9
    $region8: #{net_forward.1} parent=1 // pred_region
      %s22 = ssub.s32 3072, 3072
      %23 = vsyncadd [#allocation3], %s22
      %s24 = sshll.u32 [#allocation2], 4
      %s25 = int_to_ptr.vmem [resolvable:$true] %s24
      %30 = dma.hbm_to_vmem [thread:$0]  %s1, 3072, %s25, [#allocation3], 192, 192, 12
    $region9: #{net_forward.1} parent=1 // pred_fallthru
      _
    // Predicated region
    $region10: #{net_forward.1} parent=1 // pred_check
      _
    $region11: #{net_forward.1} parent=1 // pred_check_branch
      %32 = sbr.rel (0) target = $region13
    $region12: #{net_forward.1} parent=1 // pred_region
      _
    $region13: #{net_forward.1} parent=1 // pred_fallthru
      _
    // Predicated region
    $region14: #{net_forward.1} parent=1 // pred_check
      _
    $region15: #{net_forward.1} parent=1 // pred_check_branch
      %34 = sbr.rel (0) target = $region17
    $region16: #{net_forward.1} parent=1 // pred_region
      _
    $region17: #{net_forward.1} parent=1 // pred_fallthru
      _
    // Predicated region
    $region18: #{net_forward.1} parent=1 // pred_check
      _
    $region19: #{net_forward.1} parent=1 // pred_check_branch
      %36 = sbr.rel (0) target = $region21
    $region20: #{net_forward.1} parent=1 // pred_region
      %s38 = ssub.s32 3072, 3072
      %39 = vsyncadd [#allocation6], %s38
      %s40 = sshll.u32 [#allocation5], 4
      %s41 = int_to_ptr.vmem [resolvable:$true] %s40
      %46 = dma.hbm_to_vmem [thread:$0]  %s4, 3072, %s41, [#allocation6], 64, 64, 4
    $region21: #{net_forward.1} parent=1 // pred_fallthru
      _
    // Predicated region
    $region22: #{net_forward.1} parent=1 // pred_check
      _
    $region23: #{net_forward.1} parent=1 // pred_check_branch
      %48 = sbr.rel (0) target = $region25
    $region24: #{net_forward.1} parent=1 // pred_region
      _
    $region25: #{net_forward.1} parent=1 // pred_fallthru
      _
    // Predicated region
    $region26: #{net_forward.1} parent=1 // pred_check
      _
    $region27: #{net_forward.1} parent=1 // pred_check_branch
      %50 = sbr.rel (0) target = $region29
    $region28: #{net_forward.1} parent=1 // pred_region
      _
    $region29: #{net_forward.1} parent=1 // pred_fallthru
      _
    // Predicated region
    $region30: #{net_forward.1} parent=1 // pred_check
      _
    $region31: #{net_forward.1} parent=1 // pred_check_branch
      %52 = sbr.rel (0) target = $region33
    $region32: #{net_forward.1} parent=1 // pred_region
      %s54 = ssub.s32 1024, 1024
      %55 = vsyncadd [#allocation6], %s54
      %s56 = sshll.u32 [#allocation7], 4
      %s57 = int_to_ptr.vmem [resolvable:$true] %s56
      %62 = dma.hbm_to_vmem [thread:$0]  %s7, 1024, %s57, [#allocation6], 64, 64, 4
    $region33: #{net_forward.1} parent=1 // pred_fallthru
      _
    // Predicated region
    $region34: #{net_forward.1} parent=1 // pred_check
      _
    $region35: #{net_forward.1} parent=1 // pred_check_branch
      %64 = sbr.rel (0) target = $region37
    $region36: #{net_forward.1} parent=1 // pred_region
      _
    $region37: #{net_forward.1} parent=1 // pred_fallthru
      _
    // Predicated region
    $region38: #{net_forward.1} parent=1 // pred_check
      _
    $region39: #{net_forward.1} parent=1 // pred_check_branch
      %66 = sbr.rel (0) target = $region41
    $region40: #{net_forward.1} parent=1 // pred_region
      %67 = dma.done [#allocation3], 3072
    $region41: #{net_forward.1} parent=1 // pred_fallthru
      _
    // Predicated region
    $region42: #{net_forward.1} parent=1 // pred_check
      _
    $region43: #{net_forward.1} parent=1 // pred_check_branch
      %69 = sbr.rel (0) target = $region45
    $region44: #{net_forward.1} parent=1 // pred_region
      %70 = dma.done [#allocation6], 3072
    $region45: #{net_forward.1} parent=1 // pred_fallthru
      _
    // Predicated region
    $region46: #{net_forward.1} parent=1 // pred_check
      _
    $region47: #{net_forward.1} parent=1 // pred_check_branch
      %72 = sbr.rel (0) target = $region49
    $region48: #{net_forward.1} parent=1 // pred_region
      %73 = dma.done [#allocation6], 1024
    $region49: #{net_forward.1} parent=1 // pred_fallthru
      _
    %v75 = vld [vmem:[%s0] sm:$0xff]
    %v76 = vpack.c.bf16 %v75, %v75
    %v77 = vld [vmem:[#allocation2] sm:$0xff]
    %v78 = vld [vmem:[#allocation2 + $0x8] sm:$0xf]
    %v79 = vld [vmem:[#allocation2 + $0xc] sm:$0xff]
    %v80 = vld [vmem:[#allocation2 + $0x14] sm:$0xf]
    %v81 = vld [vmem:[#allocation2 + $0x18] sm:$0xff]
    %v82 = vld [vmem:[#allocation2 + $0x20] sm:$0xf]
    %v83 = vld [vmem:[#allocation2 + $0x24] sm:$0xff]
    %v84 = vld [vmem:[#allocation2 + $0x2c] sm:$0xf]
    %v85 = vld [vmem:[#allocation2 + $0x30] sm:$0xff]
    %v86 = vld [vmem:[#allocation2 + $0x38] sm:$0xf]
    %v87 = vld [vmem:[#allocation2 + $0x3c] sm:$0xff]
    %v88 = vld [vmem:[#allocation2 + $0x44] sm:$0xf]
    %v89 = vld [vmem:[#allocation2 + $0x48] sm:$0xff]
    %v90 = vld [vmem:[#allocation2 + $0x50] sm:$0xf]
    %v91 = vld [vmem:[#allocation2 + $0x54] sm:$0xff]
    %v92 = vld [vmem:[#allocation2 + $0x5c] sm:$0xf]
    %v93 = vld [vmem:[#allocation2 + $0x60] sm:$0xff]
    %v94 = vld [vmem:[#allocation2 + $0x68] sm:$0xf]
    %v95 = vld [vmem:[#allocation2 + $0x6c] sm:$0xff]
    %v96 = vld [vmem:[#allocation2 + $0x74] sm:$0xf]
    %v97 = vld [vmem:[#allocation2 + $0x78] sm:$0xff]
    %v98 = vld [vmem:[#allocation2 + $0x80] sm:$0xf]
    %v99 = vld [vmem:[#allocation2 + $0x84] sm:$0xff]
    %v100 = vld [vmem:[#allocation2 + $0x8c] sm:$0xf]
    %v101 = vld [vmem:[#allocation2 + $0x90] sm:$0xff]
    %v102 = vld [vmem:[#allocation2 + $0x98] sm:$0xf]
    %v103 = vld [vmem:[#allocation2 + $0x9c] sm:$0xff]
    %v104 = vld [vmem:[#allocation2 + $0xa4] sm:$0xf]
    %v105 = vld [vmem:[#allocation2 + $0xa8] sm:$0xff]
    %v106 = vld [vmem:[#allocation2 + $0xb0] sm:$0xf]
    %v107 = vld [vmem:[#allocation2 + $0xb4] sm:$0xff]
    %v108 = vld [vmem:[#allocation2 + $0xbc] sm:$0xf]
    %v141 = vunpack.c.l.b16 %v77
    %v142 = vunpack.c.h.b16 %v77
    %v143 = vunpack.c.l.b16 %v78
    %v144 = vunpack.c.l.b16 %v79
    %v145 = vunpack.c.h.b16 %v79
    %v146 = vunpack.c.l.b16 %v80
    %v147 = vunpack.c.l.b16 %v81
    %v148 = vunpack.c.h.b16 %v81
    %v149 = vunpack.c.l.b16 %v82
    %v150 = vunpack.c.l.b16 %v83
    %v151 = vunpack.c.h.b16 %v83
    %v152 = vunpack.c.l.b16 %v84
    %v153 = vunpack.c.l.b16 %v85
    %v154 = vunpack.c.h.b16 %v85
    %v155 = vunpack.c.l.b16 %v86
    %v156 = vunpack.c.l.b16 %v87
    %v157 = vunpack.c.h.b16 %v87
    %v158 = vunpack.c.l.b16 %v88
    %v159 = vunpack.c.l.b16 %v89
    %v160 = vunpack.c.h.b16 %v89
    %v161 = vunpack.c.l.b16 %v90
    %v162 = vunpack.c.l.b16 %v91
    %v163 = vunpack.c.h.b16 %v91
    %v164 = vunpack.c.l.b16 %v92
    %v165 = vunpack.c.l.b16 %v93
    %v166 = vunpack.c.h.b16 %v93
    %v167 = vunpack.c.l.b16 %v94
    %v168 = vunpack.c.l.b16 %v95
    %v169 = vunpack.c.h.b16 %v95
    %v170 = vunpack.c.l.b16 %v96
    %v171 = vunpack.c.l.b16 %v97
    %v172 = vunpack.c.h.b16 %v97
    %v173 = vunpack.c.l.b16 %v98
    %v174 = vunpack.c.l.b16 %v99
    %v175 = vunpack.c.h.b16 %v99
    %v176 = vunpack.c.l.b16 %v100
    %v177 = vunpack.c.l.b16 %v101
    %v178 = vunpack.c.h.b16 %v101
    %v179 = vunpack.c.l.b16 %v102
    %v180 = vunpack.c.l.b16 %v103
    %v181 = vunpack.c.h.b16 %v103
    %v182 = vunpack.c.l.b16 %v104
    %v183 = vunpack.c.l.b16 %v105
    %v184 = vunpack.c.h.b16 %v105
    %v185 = vunpack.c.l.b16 %v106
    %v186 = vunpack.c.l.b16 %v107
    %v187 = vunpack.c.h.b16 %v107
    %v188 = vunpack.c.l.b16 %v108
    %v189 = vpack.c.b16 %v144, %v141
    %v190 = vpack.c.b16 %v145, %v142
    %v191 = vpack.c.b16 %v146, %v143
    %v192 = vpack.c.b16 %v150, %v147
    %v193 = vpack.c.b16 %v151, %v148
    %v194 = vpack.c.b16 %v152, %v149
    %v195 = vpack.c.b16 %v156, %v153
    %v196 = vpack.c.b16 %v157, %v154
    %v197 = vpack.c.b16 %v158, %v155
    %v198 = vpack.c.b16 %v162, %v159
    %v199 = vpack.c.b16 %v163, %v160
    %v200 = vpack.c.b16 %v164, %v161
    %v201 = vpack.c.b16 %v168, %v165
    %v202 = vpack.c.b16 %v169, %v166
    %v203 = vpack.c.b16 %v170, %v167
    %v204 = vpack.c.b16 %v174, %v171
    %v205 = vpack.c.b16 %v175, %v172
    %v206 = vpack.c.b16 %v176, %v173
    %v207 = vpack.c.b16 %v180, %v177
    %v208 = vpack.c.b16 %v181, %v178
    %v209 = vpack.c.b16 %v182, %v179
    %v210 = vpack.c.b16 %v186, %v183
    %v211 = vpack.c.b16 %v187, %v184
    %v212 = vpack.c.b16 %v188, %v185
    %237 = vmatprep.subr.bf16.mxu0 %v190
    %238 = vmatpush1.bf16.msra.mxu0 %v189
    %239 = vmatprep.subr.bf16.mxu0 %v193
    %240 = vmatpush1.bf16.msra.mxu0 %v192
    %241 = vmatprep.subr.bf16.mxu0 %v196
    %242 = vmatpush1.bf16.msra.mxu0 %v195
    %243 = vmatprep.subr.bf16.mxu0 %v199
    %244 = vmatpush1.bf16.msra.mxu0 %v198
    %245 = vmatprep.subr.bf16.mxu0 %v202
    %246 = vmatpush1.bf16.msra.mxu0 %v201
    %247 = vmatprep.subr.bf16.mxu0 %v205
    %248 = vmatpush1.bf16.msra.mxu0 %v204
    %249 = vmatprep.subr.bf16.mxu0 %v208
    %250 = vmatpush1.bf16.msra.mxu0 %v207
    %251 = vmatprep.subr.bf16.mxu0 %v211
    %252 = vmatpush1.bf16.msra.mxu0 %v210
    %253 = vmatprep.subr.bf16.mxu0 0
    %254 = vmatpush1.bf16.msra.mxu0 0
    %255 = vmatprep.subr.bf16.mxu0 0
    %256 = vmatpush1.bf16.msra.mxu0 0
    %257 = vmatprep.subr.bf16.mxu0 0
    %258 = vmatpush1.bf16.msra.mxu0 0
    %259 = vmatprep.subr.bf16.mxu0 0
    %260 = vmatpush1.bf16.msra.mxu0 0
    %261 = vmatprep.subr.bf16.mxu0 0
    %262 = vmatpush1.bf16.msra.mxu0 0
    %263 = vmatprep.subr.bf16.mxu0 0
    %264 = vmatpush1.bf16.msra.mxu0 0
    %265 = vmatprep.subr.bf16.mxu0 0
    %266 = vmatpush1.bf16.msra.mxu0 0
    %267 = vmatprep.subr.bf16.mxu0 0
    %268 = vmatpush1.bf16.msra.mxu0 0
    %269 = vmatprep.mubr.bf16.mxu0 0
    %270 = vmatmul.mubr.bf16.gmra.mrb[0].mxu0 %v76
    %v271 = vpop.f32.mrb[0].mxu0
    %v272 = vadd.f32 0.0, %v271
    %v273 = vpop.f32.mrb[0].mxu0
    %v274 = vadd.f32 0.0, %v273
    %v275 = vpop.f32.mrb[0].mxu0
    %v276 = vpop.f32.mrb[0].mxu0
    %277 = vdwg.mxu0
    %278 = vmatprep.subr.bf16.mxu0 0
    %279 = vmatpush1.bf16.msra.mxu0 %v191
    %280 = vmatprep.subr.bf16.mxu0 0
    %281 = vmatpush1.bf16.msra.mxu0 %v194
    %282 = vmatprep.subr.bf16.mxu0 0
    %283 = vmatpush1.bf16.msra.mxu0 %v197
    %284 = vmatprep.subr.bf16.mxu0 0
    %285 = vmatpush1.bf16.msra.mxu0 %v200
    %286 = vmatprep.subr.bf16.mxu0 0
    %287 = vmatpush1.bf16.msra.mxu0 %v203
    %288 = vmatprep.subr.bf16.mxu0 0
    %289 = vmatpush1.bf16.msra.mxu0 %v206
    %290 = vmatprep.subr.bf16.mxu0 0
    %291 = vmatpush1.bf16.msra.mxu0 %v209
    %292 = vmatprep.subr.bf16.mxu0 0
    %293 = vmatpush1.bf16.msra.mxu0 %v212
    %294 = vmatprep.subr.bf16.mxu0 0
    %295 = vmatpush1.bf16.msra.mxu0 0
    %296 = vmatprep.subr.bf16.mxu0 0
    %297 = vmatpush1.bf16.msra.mxu0 0
    %298 = vmatprep.subr.bf16.mxu0 0
    %299 = vmatpush1.bf16.msra.mxu0 0
    %300 = vmatprep.subr.bf16.mxu0 0
    %301 = vmatpush1.bf16.msra.mxu0 0
    %302 = vmatprep.subr.bf16.mxu0 0
    %303 = vmatpush1.bf16.msra.mxu0 0
    %304 = vmatprep.subr.bf16.mxu0 0
    %305 = vmatpush1.bf16.msra.mxu0 0
    %306 = vmatprep.subr.bf16.mxu0 0
    %307 = vmatpush1.bf16.msra.mxu0 0
    %308 = vmatprep.subr.bf16.mxu0 0
    %309 = vmatpush1.bf16.msra.mxu0 0
    %310 = vmatprep.mubr.bf16.mxu0 0
    %311 = vmatmul.mubr.bf16.gmra.mrb[0].mxu0 %v76
    %v312 = vpop.f32.mrb[0].mxu0
    %v313 = vadd.f32 0.0, %v312
    %v314 = vpop.f32.mrb[0].mxu0
    %v315 = vpop.f32.mrb[0].mxu0
    %v316 = vpop.f32.mrb[0].mxu0
    %317 = vdwg.mxu0
    %v318 = vld [vmem:[%s2] sm:$0x7]
    %v319 = vld [vmem:[%s3] sm:$0x7]
    %v320 = vrot.slane %v272, 4
    %v321 = vadd.f32 %v272, %v320
    %v322 = vrot.slane %v321, 2
    %v323 = vadd.f32 %v321, %v322
    %v324 = vrot.slane %v323, 1
    %v325 = vadd.f32 %v323, %v324
    %v326 = vrot.slane %v274, 4
    %v327 = vadd.f32 %v274, %v326
    %v328 = vrot.slane %v327, 2
    %v329 = vadd.f32 %v327, %v328
    %v330 = vrot.slane %v329, 1
    %v331 = vadd.f32 %v329, %v330
    %v332 = vrot.slane %v313, 4
    %v333 = vadd.f32 %v313, %v332
    %v334 = vrot.slane %v333, 2
    %v335 = vadd.f32 %v333, %v334
    %v336 = vrot.slane %v335, 1
    %v337 = vadd.f32 %v335, %v336
    %v338 = vmul.f32 %v272, %v272
    %v339 = vmul.f32 %v274, %v274
    %v340 = vmul.f32 %v313, %v313
    %v341 = vrot.slane %v338, 4
    %v342 = vadd.f32 %v338, %v341
    %v343 = vrot.slane %v342, 2
    %v344 = vadd.f32 %v342, %v343
    %v345 = vrot.slane %v344, 1
    %v346 = vadd.f32 %v344, %v345
    %v347 = vrot.slane %v339, 4
    %v348 = vadd.f32 %v339, %v347
    %v349 = vrot.slane %v348, 2
    %v350 = vadd.f32 %v348, %v349
    %v351 = vrot.slane %v350, 1
    %v352 = vadd.f32 %v350, %v351
    %v353 = vrot.slane %v340, 4
    %v354 = vadd.f32 %v340, %v353
    %v355 = vrot.slane %v354, 2
    %v356 = vadd.f32 %v354, %v355
    %v357 = vrot.slane %v356, 1
    %v358 = vadd.f32 %v356, %v357
    %v359 = vmul.f32 %v325, 0.125
    %v360 = vmul.f32 %v331, 0.125
    %v361 = vmul.f32 %v337, 0.125
    %v362 = vmul.f32 %v346, 0.125
    %v363 = vmul.f32 %v352, 0.125
    %v364 = vmul.f32 %v358, 0.125
    %v365 = vmul.f32 %v359, %v359
    %v366 = vmul.f32 %v360, %v360
    %v367 = vmul.f32 %v361, %v361
    %v368 = vsub.f32 %v362, %v365
    %v369 = vsub.f32 %v363, %v366
    %v370 = vsub.f32 %v364, %v367
    %v371 = vmax.f32 %v368, 0.0
    %v372 = vmax.f32 %v369, 0.0
    %v373 = vmax.f32 %v370, 0.0
    %v374 = vadd.f32 %v371, 1e-05
    %v375 = vadd.f32 %v372, 1e-05
    %v376 = vadd.f32 %v373, 1e-05
    %v377 = vrsqrt.pop %v374
    %v378 = vrsqrt.pop %v375
    %v379 = vrsqrt.pop %v376
    %v383 = vcombine.low %v377, %v378
    %v385 = vunpack.c.l.s4 1966171168
    %v386 = vunpack.c.0.s8 %v385
    %v387 = vlaneseq
    %v388 = vshrl.u32 %v387, 7
    %v389 = vsub.s32 %v386, %v388
    %v390 = vrot.slane %v383, %v389
    %v392 = vunpack.c.l.s4 1966171168
    %v393 = vunpack.c.0.s8 %v392
    %v394 = vlaneseq
    %v395 = vshrl.u32 %v394, 7
    %v396 = vsub.s32 %v393, %v395
    %v397 = vrot.slane %v379, %v396
    %v398 = vcombine.low %v390, %v397
    %v400 = vunpack.c.l.s4 1966171168
    %v401 = vunpack.c.0.s8 %v400
    %v402 = vlaneseq
    %v403 = vshrl.u32 %v402, 7
    %v404 = vsub.s32 %v401, %v403
    %v405 = vrot.slane %v398, %v404
    %v407 = vmul.f32 %v318, %v405
    %v409 = vlaneseq
    %v410 = vshrl.u32 %v409, 7
    %v411 = vsub.s32 0, %v410
    %v412 = vrot.slane %v407, %v411
    %v413 = vlaneseq
    %v414 = vshrl.u32 %v413, 7
    %v415 = vsub.s32 1, %v414
    %v416 = vrot.slane %v407, %v415
    %v417 = vlaneseq
    %v418 = vshrl.u32 %v417, 7
    %v419 = vsub.s32 2, %v418
    %v420 = vrot.slane %v407, %v419
    %v424 = vmul.f32 %v359, %v412
    %v425 = vmul.f32 %v360, %v416
    %v426 = vmul.f32 %v361, %v420
    %v430 = vcombine.low %v424, %v425
    %v432 = vunpack.c.l.s4 1966171168
    %v433 = vunpack.c.0.s8 %v432
    %v434 = vlaneseq
    %v435 = vshrl.u32 %v434, 7
    %v436 = vsub.s32 %v433, %v435
    %v437 = vrot.slane %v430, %v436
    %v439 = vunpack.c.l.s4 1966171168
    %v440 = vunpack.c.0.s8 %v439
    %v441 = vlaneseq
    %v442 = vshrl.u32 %v441, 7
    %v443 = vsub.s32 %v440, %v442
    %v444 = vrot.slane %v426, %v443
    %v445 = vcombine.low %v437, %v444
    %v447 = vunpack.c.l.s4 1966171168
    %v448 = vunpack.c.0.s8 %v447
    %v449 = vlaneseq
    %v450 = vshrl.u32 %v449, 7
    %v451 = vsub.s32 %v448, %v450
    %v452 = vrot.slane %v445, %v451
    %v454 = vsub.f32 %v319, %v452
    %v455 = vmul.f32 %v272, %v412
    %v456 = vmul.f32 %v274, %v416
    %v457 = vmul.f32 %v313, %v420
    %v459 = vlaneseq
    %v460 = vshrl.u32 %v459, 7
    %v461 = vsub.s32 0, %v460
    %v462 = vrot.slane %v454, %v461
    %v463 = vlaneseq
    %v464 = vshrl.u32 %v463, 7
    %v465 = vsub.s32 1, %v464
    %v466 = vrot.slane %v454, %v465
    %v467 = vlaneseq
    %v468 = vshrl.u32 %v467, 7
    %v469 = vsub.s32 2, %v468
    %v470 = vrot.slane %v454, %v469
    %v474 = vadd.f32 %v455, %v462
    %v475 = vadd.f32 %v456, %v466
    %v476 = vadd.f32 %v457, %v470
    %v477 = vmax.f32 %v474, 0.0
    %v478 = vmax.f32 %v475, 0.0
    %v479 = vmax.f32 %v476, 0.0
    %v480 = vpack.c.bf16 %v477, %v477
    %v481 = vpack.c.bf16 %v478, %v478
    %v482 = vpack.c.bf16 %v479, %v479
    %v483 = vld [vmem:[#allocation5] sm:$0xf]
    %v484 = vld [vmem:[#allocation5 + $0x4] sm:$0xf]
    %v485 = vld [vmem:[#allocation5 + $0x8] sm:$0xf]
    %v486 = vld [vmem:[#allocation5 + $0xc] sm:$0xf]
    %v487 = vld [vmem:[#allocation5 + $0x10] sm:$0xf]
    %v488 = vld [vmem:[#allocation5 + $0x14] sm:$0xf]
    %v489 = vld [vmem:[#allocation5 + $0x18] sm:$0xf]
    %v490 = vld [vmem:[#allocation5 + $0x1c] sm:$0xf]
    %v491 = vld [vmem:[#allocation5 + $0x20] sm:$0xf]
    %v492 = vld [vmem:[#allocation5 + $0x24] sm:$0xf]
    %v493 = vld [vmem:[#allocation5 + $0x28] sm:$0xf]
    %v494 = vld [vmem:[#allocation5 + $0x2c] sm:$0xf]
    %v495 = vld [vmem:[#allocation5 + $0x30] sm:$0xf]
    %v496 = vld [vmem:[#allocation5 + $0x34] sm:$0xf]
    %v497 = vld [vmem:[#allocation5 + $0x38] sm:$0xf]
    %v498 = vld [vmem:[#allocation5 + $0x3c] sm:$0xf]
    %v499 = vld [vmem:[#allocation5 + $0x40] sm:$0xf]
    %v500 = vld [vmem:[#allocation5 + $0x44] sm:$0xf]
    %v501 = vld [vmem:[#allocation5 + $0x48] sm:$0xf]
    %v502 = vld [vmem:[#allocation5 + $0x4c] sm:$0xf]
    %v503 = vld [vmem:[#allocation5 + $0x50] sm:$0xf]
    %v504 = vld [vmem:[#allocation5 + $0x54] sm:$0xf]
    %v505 = vld [vmem:[#allocation5 + $0x58] sm:$0xf]
    %v506 = vld [vmem:[#allocation5 + $0x5c] sm:$0xf]
    %v507 = vld [vmem:[#allocation5 + $0x60] sm:$0xf]
    %v508 = vld [vmem:[#allocation5 + $0x64] sm:$0xf]
    %v509 = vld [vmem:[#allocation5 + $0x68] sm:$0xf]
    %v510 = vld [vmem:[#allocation5 + $0x6c] sm:$0xf]
    %v511 = vld [vmem:[#allocation5 + $0x70] sm:$0xf]
    %v512 = vld [vmem:[#allocation5 + $0x74] sm:$0xf]
    %v513 = vld [vmem:[#allocation5 + $0x78] sm:$0xf]
    %v514 = vld [vmem:[#allocation5 + $0x7c] sm:$0xf]
    %v515 = vld [vmem:[#allocation5 + $0x80] sm:$0xf]
    %v516 = vld [vmem:[#allocation5 + $0x84] sm:$0xf]
    %v517 = vld [vmem:[#allocation5 + $0x88] sm:$0xf]
    %v518 = vld [vmem:[#allocation5 + $0x8c] sm:$0xf]
    %v519 = vld [vmem:[#allocation5 + $0x90] sm:$0xf]
    %v520 = vld [vmem:[#allocation5 + $0x94] sm:$0xf]
    %v521 = vld [vmem:[#allocation5 + $0x98] sm:$0xf]
    %v522 = vld [vmem:[#allocation5 + $0x9c] sm:$0xf]
    %v523 = vld [vmem:[#allocation5 + $0xa0] sm:$0xf]
    %v524 = vld [vmem:[#allocation5 + $0xa4] sm:$0xf]
    %v525 = vld [vmem:[#allocation5 + $0xa8] sm:$0xf]
    %v526 = vld [vmem:[#allocation5 + $0xac] sm:$0xf]
    %v527 = vld [vmem:[#allocation5 + $0xb0] sm:$0xf]
    %v528 = vld [vmem:[#allocation5 + $0xb4] sm:$0xf]
    %v529 = vld [vmem:[#allocation5 + $0xb8] sm:$0xf]
    %v530 = vld [vmem:[#allocation5 + $0xbc] sm:$0xf]
    %v579 = vunpack.c.l.b16 %v483
    %v580 = vunpack.c.l.b16 %v484
    %v581 = vunpack.c.l.b16 %v485
    %v582 = vunpack.c.l.b16 %v486
    %v583 = vunpack.c.l.b16 %v487
    %v584 = vunpack.c.l.b16 %v488
    %v585 = vunpack.c.l.b16 %v489
    %v586 = vunpack.c.l.b16 %v490
    %v587 = vunpack.c.l.b16 %v491
    %v588 = vunpack.c.l.b16 %v492
    %v589 = vunpack.c.l.b16 %v493
    %v590 = vunpack.c.l.b16 %v494
    %v591 = vunpack.c.l.b16 %v495
    %v592 = vunpack.c.l.b16 %v496
    %v593 = vunpack.c.l.b16 %v497
    %v594 = vunpack.c.l.b16 %v498
    %v595 = vunpack.c.l.b16 %v499
    %v596 = vunpack.c.l.b16 %v500
    %v597 = vunpack.c.l.b16 %v501
    %v598 = vunpack.c.l.b16 %v502
    %v599 = vunpack.c.l.b16 %v503
    %v600 = vunpack.c.l.b16 %v504
    %v601 = vunpack.c.l.b16 %v505
    %v602 = vunpack.c.l.b16 %v506
    %v603 = vunpack.c.l.b16 %v507
    %v604 = vunpack.c.l.b16 %v508
    %v605 = vunpack.c.l.b16 %v509
    %v606 = vunpack.c.l.b16 %v510
    %v607 = vunpack.c.l.b16 %v511
    %v608 = vunpack.c.l.b16 %v512
    %v609 = vunpack.c.l.b16 %v513
    %v610 = vunpack.c.l.b16 %v514
    %v611 = vunpack.c.l.b16 %v515
    %v612 = vunpack.c.l.b16 %v516
    %v613 = vunpack.c.l.b16 %v517
    %v614 = vunpack.c.l.b16 %v518
    %v615 = vunpack.c.l.b16 %v519
    %v616 = vunpack.c.l.b16 %v520
    %v617 = vunpack.c.l.b16 %v521
    %v618 = vunpack.c.l.b16 %v522
    %v619 = vunpack.c.l.b16 %v523
    %v620 = vunpack.c.l.b16 %v524
    %v621 = vunpack.c.l.b16 %v525
    %v622 = vunpack.c.l.b16 %v526
    %v623 = vunpack.c.l.b16 %v527
    %v624 = vunpack.c.l.b16 %v528
    %v625 = vunpack.c.l.b16 %v529
    %v626 = vunpack.c.l.b16 %v530
    %v627 = vpack.c.b16 %v580, %v579
    %v628 = vpack.c.b16 %v582, %v581
    %v629 = vpack.c.b16 %v584, %v583
    %v630 = vpack.c.b16 %v586, %v585
    %v631 = vpack.c.b16 %v588, %v587
    %v632 = vpack.c.b16 %v590, %v589
    %v633 = vpack.c.b16 %v592, %v591
    %v634 = vpack.c.b16 %v594, %v593
    %v635 = vpack.c.b16 %v596, %v595
    %v636 = vpack.c.b16 %v598, %v597
    %v637 = vpack.c.b16 %v600, %v599
    %v638 = vpack.c.b16 %v602, %v601
    %v639 = vpack.c.b16 %v604, %v603
    %v640 = vpack.c.b16 %v606, %v605
    %v641 = vpack.c.b16 %v608, %v607
    %v642 = vpack.c.b16 %v610, %v609
    %v643 = vpack.c.b16 %v612, %v611
    %v644 = vpack.c.b16 %v614, %v613
    %v645 = vpack.c.b16 %v616, %v615
    %v646 = vpack.c.b16 %v618, %v617
    %v647 = vpack.c.b16 %v620, %v619
    %v648 = vpack.c.b16 %v622, %v621
    %v649 = vpack.c.b16 %v624, %v623
    %v650 = vpack.c.b16 %v626, %v625
    %675 = vmatprep.subr.bf16.mxu0 0
    %676 = vmatpush1.bf16.msra.mxu0 %v627
    %677 = vmatprep.subr.bf16.mxu0 0
    %678 = vmatpush1.bf16.msra.mxu0 %v628
    %679 = vmatprep.subr.bf16.mxu0 0
    %680 = vmatpush1.bf16.msra.mxu0 %v629
    %681 = vmatprep.subr.bf16.mxu0 0
    %682 = vmatpush1.bf16.msra.mxu0 %v630
    %683 = vmatprep.subr.bf16.mxu0 0
    %684 = vmatpush1.bf16.msra.mxu0 %v631
    %685 = vmatprep.subr.bf16.mxu0 0
    %686 = vmatpush1.bf16.msra.mxu0 %v632
    %687 = vmatprep.subr.bf16.mxu0 0
    %688 = vmatpush1.bf16.msra.mxu0 %v633
    %689 = vmatprep.subr.bf16.mxu0 0
    %690 = vmatpush1.bf16.msra.mxu0 %v634
    %691 = vmatprep.subr.bf16.mxu0 0
    %692 = vmatpush1.bf16.msra.mxu0 %v635
    %693 = vmatprep.subr.bf16.mxu0 0
    %694 = vmatpush1.bf16.msra.mxu0 %v636
    %695 = vmatprep.subr.bf16.mxu0 0
    %696 = vmatpush1.bf16.msra.mxu0 %v637
    %697 = vmatprep.subr.bf16.mxu0 0
    %698 = vmatpush1.bf16.msra.mxu0 %v638
    %699 = vmatprep.subr.bf16.mxu0 0
    %700 = vmatpush1.bf16.msra.mxu0 %v639
    %701 = vmatprep.subr.bf16.mxu0 0
    %702 = vmatpush1.bf16.msra.mxu0 %v640
    %703 = vmatprep.subr.bf16.mxu0 0
    %704 = vmatpush1.bf16.msra.mxu0 %v641
    %705 = vmatprep.subr.bf16.mxu0 0
    %706 = vmatpush1.bf16.msra.mxu0 %v642
    %707 = vmatprep.mubr.bf16.mxu0 %v481
    %708 = vmatmul.mubr.bf16.gmra.mrb[0].mxu0 %v480
    %v709 = vpop.f32.mrb[0].mxu0
    %v710 = vadd.f32 0.0, %v709
    %v711 = vpop.f32.mrb[0].mxu0
    %v712 = vpop.f32.mrb[0].mxu0
    %v713 = vpop.f32.mrb[0].mxu0
    %714 = vdwg.mxu0
    %715 = vmatprep.subr.bf16.mxu0 0
    %716 = vmatpush1.bf16.msra.mxu0 %v643
    %717 = vmatprep.subr.bf16.mxu0 0
    %718 = vmatpush1.bf16.msra.mxu0 %v644
    %719 = vmatprep.subr.bf16.mxu0 0
    %720 = vmatpush1.bf16.msra.mxu0 %v645
    %721 = vmatprep.subr.bf16.mxu0 0
    %722 = vmatpush1.bf16.msra.mxu0 %v646
    %723 = vmatprep.subr.bf16.mxu0 0
    %724 = vmatpush1.bf16.msra.mxu0 %v647
    %725 = vmatprep.subr.bf16.mxu0 0
    %726 = vmatpush1.bf16.msra.mxu0 %v648
    %727 = vmatprep.subr.bf16.mxu0 0
    %728 = vmatpush1.bf16.msra.mxu0 %v649
    %729 = vmatprep.subr.bf16.mxu0 0
    %730 = vmatpush1.bf16.msra.mxu0 %v650
    %731 = vmatprep.subr.bf16.mxu0 0
    %732 = vmatpush1.bf16.msra.mxu0 0
    %733 = vmatprep.subr.bf16.mxu0 0
    %734 = vmatpush1.bf16.msra.mxu0 0
    %735 = vmatprep.subr.bf16.mxu0 0
    %736 = vmatpush1.bf16.msra.mxu0 0
    %737 = vmatprep.subr.bf16.mxu0 0
    %738 = vmatpush1.bf16.msra.mxu0 0
    %739 = vmatprep.subr.bf16.mxu0 0
    %740 = vmatpush1.bf16.msra.mxu0 0
    %741 = vmatprep.subr.bf16.mxu0 0
    %742 = vmatpush1.bf16.msra.mxu0 0
    %743 = vmatprep.subr.bf16.mxu0 0
    %744 = vmatpush1.bf16.msra.mxu0 0
    %745 = vmatprep.subr.bf16.mxu0 0
    %746 = vmatpush1.bf16.msra.mxu0 0
    %747 = vmatprep.mubr.bf16.mxu0 0
    %748 = vmatmul.mubr.bf16.gmra.mrb[0].mxu0 %v482
    %v749 = vpop.f32.mrb[0].mxu0
    %v750 = vadd.f32 %v710, %v749
    %v751 = vpop.f32.mrb[0].mxu0
    %v752 = vpop.f32.mrb[0].mxu0
    %v753 = vpop.f32.mrb[0].mxu0
    %754 = vdwg.mxu0
    %v755 = vld [vmem:[%s5] sm:$0x1]
    %v756 = vld [vmem:[%s6] sm:$0x1]
    %v757 = vrot.slane %v750, 4
    %v758 = vadd.f32 %v750, %v757
    %v759 = vrot.slane %v758, 2
    %v760 = vadd.f32 %v758, %v759
    %v761 = vrot.slane %v760, 1
    %v762 = vadd.f32 %v760, %v761
    %v763 = vmul.f32 %v750, %v750
    %v764 = vrot.slane %v763, 4
    %v765 = vadd.f32 %v763, %v764
    %v766 = vrot.slane %v765, 2
    %v767 = vadd.f32 %v765, %v766
    %v768 = vrot.slane %v767, 1
    %v769 = vadd.f32 %v767, %v768
    %v770 = vmul.f32 %v762, 0.125
    %v771 = vmul.f32 %v769, 0.125
    %v772 = vmul.f32 %v770, %v770
    %v773 = vsub.f32 %v771, %v772
    %v774 = vmax.f32 %v773, 0.0
    %v775 = vadd.f32 %v774, 1e-05
    %v776 = vrsqrt.pop %v775
    %v777 = vmul.f32 %v755, %v776
    %v778 = vmul.f32 %v770, %v777
    %v779 = vsub.f32 %v756, %v778
    %v781 = vlaneseq
    %v782 = vshrl.u32 %v781, 7
    %v783 = vsub.s32 0, %v782
    %v784 = vrot.slane %v777, %v783
    %v786 = vmul.f32 %v750, %v784
    %v788 = vlaneseq
    %v789 = vshrl.u32 %v788, 7
    %v790 = vsub.s32 0, %v789
    %v791 = vrot.slane %v779, %v790
    %v793 = vadd.f32 %v786, %v791
    %v794 = vmax.f32 %v793, 0.0
    %v795 = vpack.c.bf16 %v794, %v794
    %v796 = vld [vmem:[#allocation7] sm:$0xf]
    %v797 = vld [vmem:[#allocation7 + $0x4] sm:$0xf]
    %v798 = vld [vmem:[#allocation7 + $0x8] sm:$0xf]
    %v799 = vld [vmem:[#allocation7 + $0xc] sm:$0xf]
    %v800 = vld [vmem:[#allocation7 + $0x10] sm:$0xf]
    %v801 = vld [vmem:[#allocation7 + $0x14] sm:$0xf]
    %v802 = vld [vmem:[#allocation7 + $0x18] sm:$0xf]
    %v803 = vld [vmem:[#allocation7 + $0x1c] sm:$0xf]
    %v804 = vld [vmem:[#allocation7 + $0x20] sm:$0xf]
    %v805 = vld [vmem:[#allocation7 + $0x24] sm:$0xf]
    %v806 = vld [vmem:[#allocation7 + $0x28] sm:$0xf]
    %v807 = vld [vmem:[#allocation7 + $0x2c] sm:$0xf]
    %v808 = vld [vmem:[#allocation7 + $0x30] sm:$0xf]
    %v809 = vld [vmem:[#allocation7 + $0x34] sm:$0xf]
    %v810 = vld [vmem:[#allocation7 + $0x38] sm:$0xf]
    %v811 = vld [vmem:[#allocation7 + $0x3c] sm:$0xf]
    %v812 = vld [vmem:[%s8] sm:$0x1]
    %v814 = vlaneseq
    %v815 = vshrl.u32 %v814, 7
    %v816 = vsub.s32 0, %v815
    %v817 = vrot.slane %v812, %v816
    %v835 = vunpack.c.l.b16 %v796
    %v836 = vunpack.c.l.b16 %v797
    %v837 = vunpack.c.l.b16 %v798
    %v838 = vunpack.c.l.b16 %v799
    %v839 = vunpack.c.l.b16 %v800
    %v840 = vunpack.c.l.b16 %v801
    %v841 = vunpack.c.l.b16 %v802
    %v842 = vunpack.c.l.b16 %v803
    %v843 = vunpack.c.l.b16 %v804
    %v844 = vunpack.c.l.b16 %v805
    %v845 = vunpack.c.l.b16 %v806
    %v846 = vunpack.c.l.b16 %v807
    %v847 = vunpack.c.l.b16 %v808
    %v848 = vunpack.c.l.b16 %v809
    %v849 = vunpack.c.l.b16 %v810
    %v850 = vunpack.c.l.b16 %v811
    %v851 = vpack.c.b16 %v836, %v835
    %v852 = vpack.c.b16 %v838, %v837
    %v853 = vpack.c.b16 %v840, %v839
    %v854 = vpack.c.b16 %v842, %v841
    %v855 = vpack.c.b16 %v844, %v843
    %v856 = vpack.c.b16 %v846, %v845
    %v857 = vpack.c.b16 %v848, %v847
    %v858 = vpack.c.b16 %v850, %v849
    %867 = vmatprep.subr.bf16.mxu0 0
    %868 = vmatpush1.bf16.msra.mxu0 %v851
    %869 = vmatprep.subr.bf16.mxu0 0
    %870 = vmatpush1.bf16.msra.mxu0 %v852
    %871 = vmatprep.subr.bf16.mxu0 0
    %872 = vmatpush1.bf16.msra.mxu0 %v853
    %873 = vmatprep.subr.bf16.mxu0 0
    %874 = vmatpush1.bf16.msra.mxu0 %v854
    %875 = vmatprep.subr.bf16.mxu0 0
    %876 = vmatpush1.bf16.msra.mxu0 %v855
    %877 = vmatprep.subr.bf16.mxu0 0
    %878 = vmatpush1.bf16.msra.mxu0 %v856
    %879 = vmatprep.subr.bf16.mxu0 0
    %880 = vmatpush1.bf16.msra.mxu0 %v857
    %881 = vmatprep.subr.bf16.mxu0 0
    %882 = vmatpush1.bf16.msra.mxu0 %v858
    %883 = vmatprep.subr.bf16.mxu0 0
    %884 = vmatpush1.bf16.msra.mxu0 0
    %885 = vmatprep.subr.bf16.mxu0 0
    %886 = vmatpush1.bf16.msra.mxu0 0
    %887 = vmatprep.subr.bf16.mxu0 0
    %888 = vmatpush1.bf16.msra.mxu0 0
    %889 = vmatprep.subr.bf16.mxu0 0
    %890 = vmatpush1.bf16.msra.mxu0 0
    %891 = vmatprep.subr.bf16.mxu0 0
    %892 = vmatpush1.bf16.msra.mxu0 0
    %893 = vmatprep.subr.bf16.mxu0 0
    %894 = vmatpush1.bf16.msra.mxu0 0
    %895 = vmatprep.subr.bf16.mxu0 0
    %896 = vmatpush1.bf16.msra.mxu0 0
    %897 = vmatprep.subr.bf16.mxu0 0
    %898 = vmatpush1.bf16.msra.mxu0 0
    %899 = vmatprep.mubr.bf16.mxu0 0
    %900 = vmatmul.mubr.bf16.gmra.mrb[0].mxu0 %v795
    %v901 = vpop.f32.mrb[0].mxu0
    %v902 = vadd.f32 %v817, %v901
    %v903 = vpop.f32.mrb[0].mxu0
    %v904 = vpop.f32.mrb[0].mxu0
    %v905 = vpop.f32.mrb[0].mxu0
    %906 = vdwg.mxu0
    %907 = vst [vmem:[#allocation8] sm:$0xff] %v902
    // Predicated region
    $region50: #{net_forward.1} parent=1 // pred_check
      _
    $region51: #{net_forward.1} parent=1 // pred_check_branch
      %909 = sbr.rel (0) target = $region53
    $region52: #{net_forward.1} parent=1 // pred_region
      %s911 = ssub.s32 128, 128
      %912 = vsyncadd [#allocation4], %s911
      %s914 = sshll.u32 [#allocation8], 4
      %s915 = int_to_ptr.vmem [resolvable:$true] %s914
      %917 = dma.vmem_to_hbm [thread:$0]  %s915, 128, %s9, [#allocation4]
    $region53: #{net_forward.1} parent=1 // pred_fallthru
      _
    // Predicated region
    $region54: #{net_forward.1} parent=1 // pred_check
      _
    $region55: #{net_forward.1} parent=1 // pred_check_branch
      %919 = sbr.rel (0) target = $region57
    $region56: #{net_forward.1} parent=1 // pred_region
      %920 = dma.done [#allocation4], 128
    $region57: #{net_forward.1} parent=1 // pred_fallthru
      _
    %921 = vsyncpa [#allocation3], 1
    %922 = vsyncpa [#allocation6], 1
    %923 = vsyncpa [#allocation4], 1

</llo_original>
